<compile_context>
chip_gen: v7x
topology: tpu7x:2x2x1
jax: 0.10.0
libtpu: 0.0.40
codegen_flags: <defaults>
</compile_context>

<pallas_src>
import functools

import jax
import jax.numpy as jnp
from jax import lax
from jax.experimental import pallas as pl
from jax.experimental.pallas import tpu as pltpu


def _round_up(n, m):
    return ((n + m - 1) // m) * m


def rnn_fc_kernel(x_ref, wih_ref, whh_ref, bias_ref, wfc_ref, bfc_ref, out_ref,
                  *, seq_len, batch_pad):
    """x_ref: (S*B_pad, I_pad) bf16 time-major flattened input (row = t*B_pad + b)."""
    S = seq_len
    B = batch_pad

    w_hh = whh_ref[...]                                   # bf16 (H_pad, H_pad), loaded once

    # (1) Input projection for every timestep as ONE MXU matmul, off the serial
    #     dependence chain: (S*B, I) @ (I, H) -> (S*B, H), bf16 in / f32 out.
    xw = jnp.dot(x_ref[...], wih_ref[...], preferred_element_type=jnp.float32)
    # (2) Combined RNN bias folded in with a single hoisted f32 broadcast.
    xwb = xw + jnp.broadcast_to(bias_ref[...], xw.shape)

    # (3) t = 0: h_0 is all zeros, so the recurrent matmul is skipped entirely.
    h = jnp.maximum(xwb[0:B, :], 0.0)                     # f32 (B, H_pad)

    # (4) Fully unrolled recurrence for t = 1..S-1: one (B,H)x(H,H) bf16 matmul
    #     per step on the serial critical path; add + ReLU stay f32 on the VPU.
    for t in range(1, S):                                 # static trip count
        pre = xwb[t * B:(t + 1) * B, :] + jnp.dot(
            h.astype(jnp.bfloat16), w_hh, preferred_element_type=jnp.float32)
        h = jnp.maximum(pre, 0.0)

    # Final Linear on the last hidden state; O is padded to 128 so this store
    # is lane-dense (no masked vst).
    out_ref[...] = (jnp.dot(h.astype(jnp.bfloat16), wfc_ref[...],
                            preferred_element_type=jnp.float32)
                    + bfc_ref[...]).astype(out_ref.dtype)


def prepare_params(params):
    """One-time weight preprocessing (pad to TPU tiles, transpose, cast to bf16).

    Hoisted out of the per-forward path so the per-call graph is just the x
    transpose/pad + the Pallas kernel.
    """
    w_ih, w_hh, b_ih, b_hh, w_fc, b_fc = params
    H, I = w_ih.shape
    O = w_fc.shape[0]
    I_pad = _round_up(I, 128)
    H_pad = _round_up(H, 128)
    O_pad = _round_up(O, 128)

    wih_t = jnp.pad(w_ih.T, ((0, I_pad - I), (0, H_pad - H))).astype(jnp.bfloat16)
    whh_t = jnp.pad(w_hh.T, ((0, H_pad - H), (0, H_pad - H))).astype(jnp.bfloat16)
    wfc_t = jnp.pad(w_fc.T, ((0, H_pad - H), (0, O_pad - O))).astype(jnp.bfloat16)
    # Biases stay f32 (elementwise path on the VPU).
    bias = jnp.pad(b_ih + b_hh, (0, H_pad - H)).reshape(1, H_pad).astype(jnp.float32)
    bfc = jnp.pad(b_fc, (0, O_pad - O)).reshape(1, O_pad).astype(jnp.float32)
    return (wih_t, whh_t, bias, wfc_t, bfc)


@functools.partial(jax.jit, static_argnames=("output_dim",))
def rnn_model_forward(x_bsi, prepared, *, output_dim):
    """x_bsi: (B, S, I) float32, batch_first like the PyTorch module."""
    wih_t, whh_t, bias, wfc_t, bfc = prepared
    B, S, I = x_bsi.shape
    I_pad = wih_t.shape[0]
    O_pad = wfc_t.shape[1]
    B_pad = _round_up(B, 8)

    # Time-major, zero-padded (one jnp.pad), flattened to a lane-dense 2-D slab,
    # cast to bf16 for single-pass MXU.  Fused under this jit with the kernel.
    x_sbi = jnp.transpose(x_bsi, (1, 0, 2))               # (S, B, I)
    x_flat = jnp.pad(
        x_sbi, ((0, 0), (0, B_pad - B), (0, I_pad - I))
    ).reshape(S * B_pad, I_pad).astype(jnp.bfloat16)

    kernel = functools.partial(rnn_fc_kernel, seq_len=S, batch_pad=B_pad)
    vmem_spec = pl.BlockSpec(memory_space=pltpu.MemorySpace.VMEM)

    out_pad = pl.pallas_call(
        kernel,
        out_shape=jax.ShapeDtypeStruct((B_pad, O_pad), jnp.float32),
        in_specs=[vmem_spec] * 6,
        out_specs=vmem_spec,
    )(x_flat, wih_t, whh_t, bias, wfc_t, bfc)

    return out_pad[:B, :output_dim]


def rnn_model_reference(x_bsi, params, matmul_dtype=jnp.float32):
    """Pure-JAX reference matching nn.RNN(relu) + Linear on last step.

    matmul_dtype=bfloat16 reproduces the kernel's MXU operand precision
    (accumulation stays f32) for a tight consistency check.
    """
    w_ih, w_hh, b_ih, b_hh, w_fc, b_fc = params
    B = x_bsi.shape[0]
    H = w_hh.shape[0]

    def mm(a, b):
        return jnp.dot(a.astype(matmul_dtype), b.astype(matmul_dtype),
                       preferred_element_type=jnp.float32)

    def step(h, x_t):
        h_new = jnp.maximum(mm(x_t, w_ih.T) + (b_ih + b_hh) + mm(h, w_hh.T), 0.0)
        return h_new, None

    h0 = jnp.zeros((B, H), jnp.float32)
    x_sbi = jnp.transpose(x_bsi, (1, 0, 2))
    h_last, _ = lax.scan(step, h0, x_sbi)
    return mm(h_last, w_fc.T) + b_fc


def init_params(key, input_dim, hidden_dim, output_dim):
    """Deterministic PyTorch-style uniform(-1/sqrt(H), 1/sqrt(H)) init."""
    ks = jax.random.split(key, 6)
    bound = 1.0 / jnp.sqrt(hidden_dim)
    w_ih = jax.random.uniform(ks[0], (hidden_dim, input_dim),
                              minval=-bound, maxval=bound)
    w_hh = jax.random.uniform(ks[1], (hidden_dim, hidden_dim),
                              minval=-bound, maxval=bound)
    b_ih = jax.random.uniform(ks[2], (hidden_dim,), minval=-bound, maxval=bound)
    b_hh = jax.random.uniform(ks[3], (hidden_dim,), minval=-bound, maxval=bound)
    w_fc = jax.random.uniform(ks[4], (output_dim, hidden_dim),
                              minval=-bound, maxval=bound)
    b_fc = jax.random.uniform(ks[5], (output_dim,), minval=-bound, maxval=bound)
    return (w_ih.astype(jnp.float32), w_hh.astype(jnp.float32),
            b_ih.astype(jnp.float32), b_hh.astype(jnp.float32),
            w_fc.astype(jnp.float32), b_fc.astype(jnp.float32))


if __name__ == "__main__":
    # Module dims: input_dim=20, hidden_dim=100, output_dim=10.
    input_dim, hidden_dim, output_dim = 20, 100, 10
    batch, seq = 4, 8

    key = jax.random.PRNGKey(0)
    k_x, k_p = jax.random.split(key)
    x = jax.random.normal(k_x, (batch, seq, input_dim), dtype=jnp.float32)
    params = init_params(k_p, input_dim, hidden_dim, output_dim)

    # One-time weight preprocessing (hoisted out of the per-forward path).
    prepared = prepare_params(params)

    out = rnn_model_forward(x, prepared, output_dim=output_dim)
    out = jax.block_until_ready(out)
    assert out.shape == (batch, output_dim)

    # Tight check against a reference that uses the same bf16-operand / f32-acc
    # matmul precision as the kernel.
    ref_bf16 = rnn_model_reference(x, params, matmul_dtype=jnp.bfloat16)
    err_bf16 = float(jnp.max(jnp.abs(out - ref_bf16)))
    assert err_bf16 < 2e-3, f"bf16-consistent max abs err {err_bf16}"

    # Relaxed check against the full-f32 PyTorch-semantics reference (bf16 MXU
    # operands over an 8-step recurrence -> tolerance ~1e-2 per the review).
    ref_f32 = rnn_model_reference(x, params, matmul_dtype=jnp.float32)
    err_f32 = float(jnp.max(jnp.abs(out - ref_f32)))
    assert err_f32 < 5e-2, f"f32 reference max abs err {err_f32}"

    print("KERNEL_OK")
</pallas_src>

<mosaic_0001>
module attributes {stable_mosaic.version = 11 : i64} {
  func.func @rnn_fc_kernel(%arg0: memref<64x128xbf16, #tpu.memory_space<vmem>>, %arg1: memref<128x128xbf16, #tpu.memory_space<vmem>>, %arg2: memref<128x128xbf16, #tpu.memory_space<vmem>>, %arg3: memref<1x128xf32, #tpu.memory_space<vmem>>, %arg4: memref<128x128xbf16, #tpu.memory_space<vmem>>, %arg5: memref<1x128xf32, #tpu.memory_space<vmem>>, %arg6: memref<8x128xf32, #tpu.memory_space<vmem>>) attributes {dimension_semantics = [], scalar_prefetch = 0 : i64, scratch_operands = 0 : i64, tpu.core_type = #tpu.core_type<tc>} {
    %c0 = arith.constant 0 : index
    %c0_0 = arith.constant 0 : index
    %0 = vector.load %arg2[%c0, %c0_0] : memref<128x128xbf16, #tpu.memory_space<vmem>>, vector<128x128xbf16>
    %c0_1 = arith.constant 0 : index
    %c0_2 = arith.constant 0 : index
    %1 = vector.load %arg0[%c0_1, %c0_2] : memref<64x128xbf16, #tpu.memory_space<vmem>>, vector<64x128xbf16>
    %c0_3 = arith.constant 0 : index
    %c0_4 = arith.constant 0 : index
    %2 = vector.load %arg1[%c0_3, %c0_4] : memref<128x128xbf16, #tpu.memory_space<vmem>>, vector<128x128xbf16>
    %cst = arith.constant dense<0.000000e+00> : vector<64x128xf32>
    %3 = tpu.matmul %1, %2, %cst {dimension_numbers = #tpu.dot_dimension_numbers<[1], [0], [0], [1], [0, 0, 1, 1], [], []>} : vector<64x128xbf16>, vector<128x128xbf16>, vector<64x128xf32> -> vector<64x128xf32>
    %c0_5 = arith.constant 0 : index
    %c0_6 = arith.constant 0 : index
    %4 = vector.load %arg3[%c0_5, %c0_6] : memref<1x128xf32, #tpu.memory_space<vmem>>, vector<1x128xf32>
    %5 = vector.shape_cast %4 : vector<1x128xf32> to vector<1x128xf32>
    %6 = vector.broadcast %5 : vector<1x128xf32> to vector<64x128xf32>
    %7 = arith.addf %3, %6 : vector<64x128xf32>
    %8 = vector.extract_strided_slice %7 {offsets = [0, 0], sizes = [8, 128], strides = [1, 1]} : vector<64x128xf32> to vector<8x128xf32>
    %cst_7 = arith.constant 0.000000e+00 : f32
    %9 = vector.broadcast %cst_7 : f32 to vector<8x128xf32>
    %10 = arith.maximumf %8, %9 : vector<8x128xf32>
    %11 = vector.extract_strided_slice %7 {offsets = [8, 0], sizes = [8, 128], strides = [1, 1]} : vector<64x128xf32> to vector<8x128xf32>
    %12 = arith.truncf %10 : vector<8x128xf32> to vector<8x128xbf16>
    %cst_8 = arith.constant dense<0.000000e+00> : vector<8x128xf32>
    %13 = tpu.matmul %12, %0, %cst_8 {dimension_numbers = #tpu.dot_dimension_numbers<[1], [0], [0], [1], [0, 0, 1, 1], [], []>} : vector<8x128xbf16>, vector<128x128xbf16>, vector<8x128xf32> -> vector<8x128xf32>
    %14 = arith.addf %11, %13 : vector<8x128xf32>
    %cst_9 = arith.constant 0.000000e+00 : f32
    %15 = vector.broadcast %cst_9 : f32 to vector<8x128xf32>
    %16 = arith.maximumf %14, %15 : vector<8x128xf32>
    %17 = vector.extract_strided_slice %7 {offsets = [16, 0], sizes = [8, 128], strides = [1, 1]} : vector<64x128xf32> to vector<8x128xf32>
    %18 = arith.truncf %16 : vector<8x128xf32> to vector<8x128xbf16>
    %cst_10 = arith.constant dense<0.000000e+00> : vector<8x128xf32>
    %19 = tpu.matmul %18, %0, %cst_10 {dimension_numbers = #tpu.dot_dimension_numbers<[1], [0], [0], [1], [0, 0, 1, 1], [], []>} : vector<8x128xbf16>, vector<128x128xbf16>, vector<8x128xf32> -> vector<8x128xf32>
    %20 = arith.addf %17, %19 : vector<8x128xf32>
    %cst_11 = arith.constant 0.000000e+00 : f32
    %21 = vector.broadcast %cst_11 : f32 to vector<8x128xf32>
    %22 = arith.maximumf %20, %21 : vector<8x128xf32>
    %23 = vector.extract_strided_slice %7 {offsets = [24, 0], sizes = [8, 128], strides = [1, 1]} : vector<64x128xf32> to vector<8x128xf32>
    %24 = arith.truncf %22 : vector<8x128xf32> to vector<8x128xbf16>
    %cst_12 = arith.constant dense<0.000000e+00> : vector<8x128xf32>
    %25 = tpu.matmul %24, %0, %cst_12 {dimension_numbers = #tpu.dot_dimension_numbers<[1], [0], [0], [1], [0, 0, 1, 1], [], []>} : vector<8x128xbf16>, vector<128x128xbf16>, vector<8x128xf32> -> vector<8x128xf32>
    %26 = arith.addf %23, %25 : vector<8x128xf32>
    %cst_13 = arith.constant 0.000000e+00 : f32
    %27 = vector.broadcast %cst_13 : f32 to vector<8x128xf32>
    %28 = arith.maximumf %26, %27 : vector<8x128xf32>
    %29 = vector.extract_strided_slice %7 {offsets = [32, 0], sizes = [8, 128], strides = [1, 1]} : vector<64x128xf32> to vector<8x128xf32>
    %30 = arith.truncf %28 : vector<8x128xf32> to vector<8x128xbf16>
    %cst_14 = arith.constant dense<0.000000e+00> : vector<8x128xf32>
    %31 = tpu.matmul %30, %0, %cst_14 {dimension_numbers = #tpu.dot_dimension_numbers<[1], [0], [0], [1], [0, 0, 1, 1], [], []>} : vector<8x128xbf16>, vector<128x128xbf16>, vector<8x128xf32> -> vector<8x128xf32>
    %32 = arith.addf %29, %31 : vector<8x128xf32>
    %cst_15 = arith.constant 0.000000e+00 : f32
    %33 = vector.broadcast %cst_15 : f32 to vector<8x128xf32>
    %34 = arith.maximumf %32, %33 : vector<8x128xf32>
    %35 = vector.extract_strided_slice %7 {offsets = [40, 0], sizes = [8, 128], strides = [1, 1]} : vector<64x128xf32> to vector<8x128xf32>
    %36 = arith.truncf %34 : vector<8x128xf32> to vector<8x128xbf16>
    %cst_16 = arith.constant dense<0.000000e+00> : vector<8x128xf32>
    %37 = tpu.matmul %36, %0, %cst_16 {dimension_numbers = #tpu.dot_dimension_numbers<[1], [0], [0], [1], [0, 0, 1, 1], [], []>} : vector<8x128xbf16>, vector<128x128xbf16>, vector<8x128xf32> -> vector<8x128xf32>
    %38 = arith.addf %35, %37 : vector<8x128xf32>
    %cst_17 = arith.constant 0.000000e+00 : f32
    %39 = vector.broadcast %cst_17 : f32 to vector<8x128xf32>
    %40 = arith.maximumf %38, %39 : vector<8x128xf32>
    %41 = vector.extract_strided_slice %7 {offsets = [48, 0], sizes = [8, 128], strides = [1, 1]} : vector<64x128xf32> to vector<8x128xf32>
    %42 = arith.truncf %40 : vector<8x128xf32> to vector<8x128xbf16>
    %cst_18 = arith.constant dense<0.000000e+00> : vector<8x128xf32>
    %43 = tpu.matmul %42, %0, %cst_18 {dimension_numbers = #tpu.dot_dimension_numbers<[1], [0], [0], [1], [0, 0, 1, 1], [], []>} : vector<8x128xbf16>, vector<128x128xbf16>, vector<8x128xf32> -> vector<8x128xf32>
    %44 = arith.addf %41, %43 : vector<8x128xf32>
    %cst_19 = arith.constant 0.000000e+00 : f32
    %45 = vector.broadcast %cst_19 : f32 to vector<8x128xf32>
    %46 = arith.maximumf %44, %45 : vector<8x128xf32>
    %47 = vector.extract_strided_slice %7 {offsets = [56, 0], sizes = [8, 128], strides = [1, 1]} : vector<64x128xf32> to vector<8x128xf32>
    %48 = arith.truncf %46 : vector<8x128xf32> to vector<8x128xbf16>
    %cst_20 = arith.constant dense<0.000000e+00> : vector<8x128xf32>
    %49 = tpu.matmul %48, %0, %cst_20 {dimension_numbers = #tpu.dot_dimension_numbers<[1], [0], [0], [1], [0, 0, 1, 1], [], []>} : vector<8x128xbf16>, vector<128x128xbf16>, vector<8x128xf32> -> vector<8x128xf32>
    %50 = arith.addf %47, %49 : vector<8x128xf32>
    %cst_21 = arith.constant 0.000000e+00 : f32
    %51 = vector.broadcast %cst_21 : f32 to vector<8x128xf32>
    %52 = arith.maximumf %50, %51 : vector<8x128xf32>
    %53 = arith.truncf %52 : vector<8x128xf32> to vector<8x128xbf16>
    %c0_22 = arith.constant 0 : index
    %c0_23 = arith.constant 0 : index
    %54 = vector.load %arg4[%c0_22, %c0_23] : memref<128x128xbf16, #tpu.memory_space<vmem>>, vector<128x128xbf16>
    %cst_24 = arith.constant dense<0.000000e+00> : vector<8x128xf32>
    %55 = tpu.matmul %53, %54, %cst_24 {dimension_numbers = #tpu.dot_dimension_numbers<[1], [0], [0], [1], [0, 0, 1, 1], [], []>} : vector<8x128xbf16>, vector<128x128xbf16>, vector<8x128xf32> -> vector<8x128xf32>
    %c0_25 = arith.constant 0 : index
    %c0_26 = arith.constant 0 : index
    %56 = vector.load %arg5[%c0_25, %c0_26] : memref<1x128xf32, #tpu.memory_space<vmem>>, vector<1x128xf32>
    %57 = vector.broadcast %56 : vector<1x128xf32> to vector<8x128xf32>
    %58 = arith.addf %55, %57 : vector<8x128xf32>
    %c0_27 = arith.constant 0 : index
    %c0_28 = arith.constant 0 : index
    %59 = vector.load %arg6[%c0_27, %c0_28] : memref<8x128xf32, #tpu.memory_space<vmem>>, vector<8x128xf32>
    tpu.vector_store %arg6[%c0_27, %c0_28], %58 {strides = array<i32>} : memref<8x128xf32, #tpu.memory_space<vmem>>, vector<8x128xf32>,
    return
  }
}

</mosaic_0001>

<llo_original>
// kernel: rnn_model_forward.1
$region0: #{rnn_model_forward.1}
  #allocation0 [shape = 'u32[]', space=smem, size = 0x4, offset = 0x4, fixed_abs, tag = 'smem constant byte address 0x4 - core index']
  #allocation1 [shape = 'u32[144,128]{1,0:T(1,128)}', space=vmem, size = 0x12000, scoped, tag = 'internal scratch']
  %s0 = inlined_call_operand.vmem [shape: bf16[64,128], index: 0, kind: input, shape index: {}]
  %s1 = inlined_call_operand.vmem [shape: bf16[128,128], index: 1, kind: input, shape index: {}]
  %s2 = inlined_call_operand.vmem [shape: bf16[128,128], index: 2, kind: input, shape index: {}]
  %s3 = inlined_call_operand.vmem [shape: f32[1,128], index: 3, kind: input, shape index: {}]
  %s4 = inlined_call_operand.hbm [shape: bf16[128,128], index: 4, kind: input, shape index: {}]
  %s5 = inlined_call_operand.vmem [shape: f32[1,128], index: 5, kind: input, shape index: {}]
  %s6 = inlined_call_operand.vmem [shape: f32[8,128], index: 6, kind: output, shape index: {}]
  %s7 = sld [smem:[#allocation0]]
  $region38: #{rnn_model_forward.1} parent=0
    _
  %s9 = ssub.s32 1, %s7
  %s10 = scalar_select 0, %s9, %s7
  $region1: #{rnn_model_forward.1} parent=0
    #allocation2 [shape = 'u8[32768]{0}', space=vmem, size = 0x8000, scoped, tag = 'input window, operand 4, single buffered']
    #allocation3 [shape = 's32[1]{0}', space=sflag, size = 0x4, scoped, tag = 'scoped memory for rnn_model_forward.1']
    %11 = vsyncpa [#allocation3], 0
    // Predicated region
    $region2: #{rnn_model_forward.1} parent=1 // pred_check
      _
    $region3: #{rnn_model_forward.1} parent=1 // pred_check_branch
      %13 = sbr.rel (0) target = $region5
    $region4: #{rnn_model_forward.1} parent=1 // pred_region
      _
    $region5: #{rnn_model_forward.1} parent=1 // pred_fallthru
      _
    // Predicated region
    $region6: #{rnn_model_forward.1} parent=1 // pred_check
      _
    $region7: #{rnn_model_forward.1} parent=1 // pred_check_branch
      %15 = sbr.rel (0) target = $region9
    $region8: #{rnn_model_forward.1} parent=1 // pred_region
      _
    $region9: #{rnn_model_forward.1} parent=1 // pred_fallthru
      _
    // Predicated region
    $region10: #{rnn_model_forward.1} parent=1 // pred_check
      _
    $region11: #{rnn_model_forward.1} parent=1 // pred_check_branch
      %17 = sbr.rel (0) target = $region13
    $region12: #{rnn_model_forward.1} parent=1 // pred_region
      _
    $region13: #{rnn_model_forward.1} parent=1 // pred_fallthru
      _
    // Predicated region
    $region14: #{rnn_model_forward.1} parent=1 // pred_check
      _
    $region15: #{rnn_model_forward.1} parent=1 // pred_check_branch
      %19 = sbr.rel (0) target = $region17
    $region16: #{rnn_model_forward.1} parent=1 // pred_region
      _
    $region17: #{rnn_model_forward.1} parent=1 // pred_fallthru
      _
    // Predicated region
    $region18: #{rnn_model_forward.1} parent=1 // pred_check
      _
    $region19: #{rnn_model_forward.1} parent=1 // pred_check_branch
      %21 = sbr.rel (0) target = $region21
    $region20: #{rnn_model_forward.1} parent=1 // pred_region
      %s23 = ssub.s32 1024, 1024
      %24 = vsyncadd [#allocation3], %s23
      %s25 = sshll.u32 [#allocation2], 4
      %s26 = int_to_ptr.vmem [resolvable:$true] %s25
      %31 = dma.hbm_to_vmem [thread:$0]  %s4, 1024, %s26, [#allocation3], 64, 64, 4
    $region21: #{rnn_model_forward.1} parent=1 // pred_fallthru
      _
    // Predicated region
    $region22: #{rnn_model_forward.1} parent=1 // pred_check
      _
    $region23: #{rnn_model_forward.1} parent=1 // pred_check_branch
      %33 = sbr.rel (0) target = $region25
    $region24: #{rnn_model_forward.1} parent=1 // pred_region
      _
    $region25: #{rnn_model_forward.1} parent=1 // pred_fallthru
      _
    // Predicated region
    $region26: #{rnn_model_forward.1} parent=1 // pred_check
      _
    $region27: #{rnn_model_forward.1} parent=1 // pred_check_branch
      %35 = sbr.rel (0) target = $region29
    $region28: #{rnn_model_forward.1} parent=1 // pred_region
      %36 = dma.done [#allocation3], 1024
    $region29: #{rnn_model_forward.1} parent=1 // pred_fallthru
      _
    %v38 = vld [vmem:[%s2] sm:$0xf]
    %v39 = vld [vmem:[%s2 + $0x4] sm:$0xf]
    %v40 = vld [vmem:[%s2 + $0x8] sm:$0xf]
    %v41 = vld [vmem:[%s2 + $0xc] sm:$0xf]
    %v42 = vld [vmem:[%s2 + $0x10] sm:$0xf]
    %v43 = vld [vmem:[%s2 + $0x14] sm:$0xf]
    %v44 = vld [vmem:[%s2 + $0x18] sm:$0xf]
    %v45 = vld [vmem:[%s2 + $0x1c] sm:$0xf]
    %v46 = vld [vmem:[%s2 + $0x20] sm:$0xf]
    %v47 = vld [vmem:[%s2 + $0x24] sm:$0xf]
    %v48 = vld [vmem:[%s2 + $0x28] sm:$0xf]
    %v49 = vld [vmem:[%s2 + $0x2c] sm:$0xf]
    %v50 = vld [vmem:[%s2 + $0x30] sm:$0xf]
    %v51 = vld [vmem:[%s2 + $0x34] sm:$0xf]
    %v52 = vld [vmem:[%s2 + $0x38] sm:$0xf]
    %v53 = vld [vmem:[%s2 + $0x3c] sm:$0xf]
    %v54 = vld [vmem:[%s0] sm:$0xf]
    %v55 = vld [vmem:[%s0 + $0x4] sm:$0xf]
    %v56 = vld [vmem:[%s0 + $0x8] sm:$0xf]
    %v57 = vld [vmem:[%s0 + $0xc] sm:$0xf]
    %v58 = vld [vmem:[%s0 + $0x10] sm:$0xf]
    %v59 = vld [vmem:[%s0 + $0x14] sm:$0xf]
    %v60 = vld [vmem:[%s0 + $0x18] sm:$0xf]
    %v61 = vld [vmem:[%s0 + $0x1c] sm:$0xf]
    %v62 = vld [vmem:[%s1] sm:$0xf]
    %v63 = vld [vmem:[%s1 + $0x4] sm:$0xf]
    %v64 = vld [vmem:[%s1 + $0x8] sm:$0xf]
    %v65 = vld [vmem:[%s1 + $0xc] sm:$0xf]
    %v66 = vld [vmem:[%s1 + $0x10] sm:$0xf]
    %v67 = vld [vmem:[%s1 + $0x14] sm:$0xf]
    %v68 = vld [vmem:[%s1 + $0x18] sm:$0xf]
    %v69 = vld [vmem:[%s1 + $0x1c] sm:$0xf]
    %v70 = vld [vmem:[%s1 + $0x20] sm:$0xf]
    %v71 = vld [vmem:[%s1 + $0x24] sm:$0xf]
    %v72 = vld [vmem:[%s1 + $0x28] sm:$0xf]
    %v73 = vld [vmem:[%s1 + $0x2c] sm:$0xf]
    %v74 = vld [vmem:[%s1 + $0x30] sm:$0xf]
    %v75 = vld [vmem:[%s1 + $0x34] sm:$0xf]
    %v76 = vld [vmem:[%s1 + $0x38] sm:$0xf]
    %v77 = vld [vmem:[%s1 + $0x3c] sm:$0xf]
    %v78 = vld [vmem:[%s3] sm:$0x1]
    %v80 = vlaneseq
    %v81 = vshrl.u32 %v80, 7
    %v82 = vsub.s32 0, %v81
    %v83 = vrot.slane %v78, %v82
    %v93 = vunpack.c.l.b16 %v54
    %v94 = vunpack.c.l.b16 %v55
    %v95 = vunpack.c.l.b16 %v56
    %v96 = vunpack.c.l.b16 %v57
    %v97 = vunpack.c.l.b16 %v58
    %v98 = vunpack.c.l.b16 %v59
    %v99 = vunpack.c.l.b16 %v60
    %v100 = vunpack.c.l.b16 %v61
    %v101 = vpack.c.b16 %v94, %v93
    %v102 = vpack.c.b16 %v96, %v95
    %v103 = vpack.c.b16 %v98, %v97
    %v104 = vpack.c.b16 %v100, %v99
    %v125 = vunpack.c.l.b16 %v62
    %v126 = vunpack.c.l.b16 %v63
    %v127 = vunpack.c.l.b16 %v64
    %v128 = vunpack.c.l.b16 %v65
    %v129 = vunpack.c.l.b16 %v66
    %v130 = vunpack.c.l.b16 %v67
    %v131 = vunpack.c.l.b16 %v68
    %v132 = vunpack.c.l.b16 %v69
    %v133 = vunpack.c.l.b16 %v70
    %v134 = vunpack.c.l.b16 %v71
    %v135 = vunpack.c.l.b16 %v72
    %v136 = vunpack.c.l.b16 %v73
    %v137 = vunpack.c.l.b16 %v74
    %v138 = vunpack.c.l.b16 %v75
    %v139 = vunpack.c.l.b16 %v76
    %v140 = vunpack.c.l.b16 %v77
    %v141 = vpack.c.b16 %v126, %v125
    %v142 = vpack.c.b16 %v128, %v127
    %v143 = vpack.c.b16 %v130, %v129
    %v144 = vpack.c.b16 %v132, %v131
    %v145 = vpack.c.b16 %v134, %v133
    %v146 = vpack.c.b16 %v136, %v135
    %v147 = vpack.c.b16 %v138, %v137
    %v148 = vpack.c.b16 %v140, %v139
    %157 = vmatprep.subr.bf16.mxu0 0
    %158 = vmatpush1.bf16.msra.mxu0 %v141
    %159 = vmatprep.subr.bf16.mxu0 0
    %160 = vmatpush1.bf16.msra.mxu0 %v142
    %161 = vmatprep.subr.bf16.mxu0 0
    %162 = vmatpush1.bf16.msra.mxu0 %v143
    %163 = vmatprep.subr.bf16.mxu0 0
    %164 = vmatpush1.bf16.msra.mxu0 %v144
    %165 = vmatprep.subr.bf16.mxu0 0
    %166 = vmatpush1.bf16.msra.mxu0 %v145
    %167 = vmatprep.subr.bf16.mxu0 0
    %168 = vmatpush1.bf16.msra.mxu0 %v146
    %169 = vmatprep.subr.bf16.mxu0 0
    %170 = vmatpush1.bf16.msra.mxu0 %v147
    %171 = vmatprep.subr.bf16.mxu0 0
    %172 = vmatpush1.bf16.msra.mxu0 %v148
    %173 = vmatprep.subr.bf16.mxu0 0
    %174 = vmatpush1.bf16.msra.mxu0 0
    %175 = vmatprep.subr.bf16.mxu0 0
    %176 = vmatpush1.bf16.msra.mxu0 0
    %177 = vmatprep.subr.bf16.mxu0 0
    %178 = vmatpush1.bf16.msra.mxu0 0
    %179 = vmatprep.subr.bf16.mxu0 0
    %180 = vmatpush1.bf16.msra.mxu0 0
    %181 = vmatprep.subr.bf16.mxu0 0
    %182 = vmatpush1.bf16.msra.mxu0 0
    %183 = vmatprep.subr.bf16.mxu0 0
    %184 = vmatpush1.bf16.msra.mxu0 0
    %185 = vmatprep.subr.bf16.mxu0 0
    %186 = vmatpush1.bf16.msra.mxu0 0
    %187 = vmatprep.subr.bf16.mxu0 0
    %188 = vmatpush1.bf16.msra.mxu0 0
    %189 = vmatprep.mubr.bf16.mxu0 0
    %190 = vmatmul.mubr.bf16.gmra.mrb[0].mxu0 %v101
    %v191 = vpop.f32.mrb[0].mxu0
    %v192 = vadd.f32 %v83, %v191
    %v193 = vpop.f32.mrb[0].mxu0
    %v194 = vpop.f32.mrb[0].mxu0
    %v195 = vadd.f32 %v83, %v194
    %v196 = vpop.f32.mrb[0].mxu0
    %197 = vmatprep.mubr.bf16.mxu0 0
    %198 = vmatmul.mubr.bf16.gmra.mrb[0].mxu0 %v102
    %v199 = vpop.f32.mrb[0].mxu0
    %v200 = vadd.f32 %v83, %v199
    %v201 = vpop.f32.mrb[0].mxu0
    %v202 = vpop.f32.mrb[0].mxu0
    %v203 = vadd.f32 %v83, %v202
    %v204 = vpop.f32.mrb[0].mxu0
    %205 = vmatprep.mubr.bf16.mxu0 0
    %206 = vmatmul.mubr.bf16.gmra.mrb[0].mxu0 %v103
    %v207 = vpop.f32.mrb[0].mxu0
    %v208 = vadd.f32 %v83, %v207
    %v209 = vpop.f32.mrb[0].mxu0
    %v210 = vpop.f32.mrb[0].mxu0
    %v211 = vadd.f32 %v83, %v210
    %v212 = vpop.f32.mrb[0].mxu0
    %213 = vmatprep.mubr.bf16.mxu0 0
    %214 = vmatmul.mubr.bf16.gmra.mrb[0].mxu0 %v104
    %v215 = vpop.f32.mrb[0].mxu0
    %v216 = vadd.f32 %v83, %v215
    %v217 = vpop.f32.mrb[0].mxu0
    %v218 = vpop.f32.mrb[0].mxu0
    %v219 = vadd.f32 %v83, %v218
    %v220 = vpop.f32.mrb[0].mxu0
    %221 = vdwg.mxu0
    %v222 = vmax.f32 %v192, 0.0
    %v223 = vpack.c.bf16 %v222, %v222
    %v240 = vunpack.c.l.b16 %v38
    %v241 = vunpack.c.l.b16 %v39
    %v242 = vunpack.c.l.b16 %v40
    %v243 = vunpack.c.l.b16 %v41
    %v244 = vunpack.c.l.b16 %v42
    %v245 = vunpack.c.l.b16 %v43
    %v246 = vunpack.c.l.b16 %v44
    %v247 = vunpack.c.l.b16 %v45
    %v248 = vunpack.c.l.b16 %v46
    %v249 = vunpack.c.l.b16 %v47
    %v250 = vunpack.c.l.b16 %v48
    %v251 = vunpack.c.l.b16 %v49
    %v252 = vunpack.c.l.b16 %v50
    %v253 = vunpack.c.l.b16 %v51
    %v254 = vunpack.c.l.b16 %v52
    %v255 = vunpack.c.l.b16 %v53
    %v256 = vpack.c.b16 %v241, %v240
    %v257 = vpack.c.b16 %v243, %v242
    %v258 = vpack.c.b16 %v245, %v244
    %v259 = vpack.c.b16 %v247, %v246
    %v260 = vpack.c.b16 %v249, %v248
    %v261 = vpack.c.b16 %v251, %v250
    %v262 = vpack.c.b16 %v253, %v252
    %v263 = vpack.c.b16 %v255, %v254
    %272 = vmatprep.subr.bf16.mxu0 0
    %273 = vmatpush1.bf16.msra.mxu0 %v256
    %274 = vmatprep.subr.bf16.mxu0 0
    %275 = vmatpush1.bf16.msra.mxu0 %v257
    %276 = vmatprep.subr.bf16.mxu0 0
    %277 = vmatpush1.bf16.msra.mxu0 %v258
    %278 = vmatprep.subr.bf16.mxu0 0
    %279 = vmatpush1.bf16.msra.mxu0 %v259
    %280 = vmatprep.subr.bf16.mxu0 0
    %281 = vmatpush1.bf16.msra.mxu0 %v260
    %282 = vmatprep.subr.bf16.mxu0 0
    %283 = vmatpush1.bf16.msra.mxu0 %v261
    %284 = vmatprep.subr.bf16.mxu0 0
    %285 = vmatpush1.bf16.msra.mxu0 %v262
    %286 = vmatprep.subr.bf16.mxu0 0
    %287 = vmatpush1.bf16.msra.mxu0 %v263
    %288 = vmatprep.subr.bf16.mxu0 0
    %289 = vmatpush1.bf16.msra.mxu0 0
    %290 = vmatprep.subr.bf16.mxu0 0
    %291 = vmatpush1.bf16.msra.mxu0 0
    %292 = vmatprep.subr.bf16.mxu0 0
    %293 = vmatpush1.bf16.msra.mxu0 0
    %294 = vmatprep.subr.bf16.mxu0 0
    %295 = vmatpush1.bf16.msra.mxu0 0
    %296 = vmatprep.subr.bf16.mxu0 0
    %297 = vmatpush1.bf16.msra.mxu0 0
    %298 = vmatprep.subr.bf16.mxu0 0
    %299 = vmatpush1.bf16.msra.mxu0 0
    %300 = vmatprep.subr.bf16.mxu0 0
    %301 = vmatpush1.bf16.msra.mxu0 0
    %302 = vmatprep.subr.bf16.mxu0 0
    %303 = vmatpush1.bf16.msra.mxu0 0
    %304 = vmatprep.mubr.bf16.mxu0 0
    %305 = vmatmul.mubr.bf16.gmra.mrb[0].mxu0 %v223
    %v306 = vpop.f32.mrb[0].mxu0
    %v307 = vadd.f32 0.0, %v306
    %v308 = vpop.f32.mrb[0].mxu0
    %v309 = vpop.f32.mrb[0].mxu0
    %v310 = vpop.f32.mrb[0].mxu0
    %311 = vdwg.mxu0
    %v312 = vadd.f32 %v195, %v307
    %v313 = vmax.f32 %v312, 0.0
    %v314 = vpack.c.bf16 %v313, %v313
    %315 = vmatprep.subr.bf16.mxu0 0
    %316 = vmatpush1.bf16.msra.mxu0 %v256
    %317 = vmatprep.subr.bf16.mxu0 0
    %318 = vmatpush1.bf16.msra.mxu0 %v257
    %319 = vmatprep.subr.bf16.mxu0 0
    %320 = vmatpush1.bf16.msra.mxu0 %v258
    %321 = vmatprep.subr.bf16.mxu0 0
    %322 = vmatpush1.bf16.msra.mxu0 %v259
    %323 = vmatprep.subr.bf16.mxu0 0
    %324 = vmatpush1.bf16.msra.mxu0 %v260
    %325 = vmatprep.subr.bf16.mxu0 0
    %326 = vmatpush1.bf16.msra.mxu0 %v261
    %327 = vmatprep.subr.bf16.mxu0 0
    %328 = vmatpush1.bf16.msra.mxu0 %v262
    %329 = vmatprep.subr.bf16.mxu0 0
    %330 = vmatpush1.bf16.msra.mxu0 %v263
    %331 = vmatprep.subr.bf16.mxu0 0
    %332 = vmatpush1.bf16.msra.mxu0 0
    %333 = vmatprep.subr.bf16.mxu0 0
    %334 = vmatpush1.bf16.msra.mxu0 0
    %335 = vmatprep.subr.bf16.mxu0 0
    %336 = vmatpush1.bf16.msra.mxu0 0
    %337 = vmatprep.subr.bf16.mxu0 0
    %338 = vmatpush1.bf16.msra.mxu0 0
    %339 = vmatprep.subr.bf16.mxu0 0
    %340 = vmatpush1.bf16.msra.mxu0 0
    %341 = vmatprep.subr.bf16.mxu0 0
    %342 = vmatpush1.bf16.msra.mxu0 0
    %343 = vmatprep.subr.bf16.mxu0 0
    %344 = vmatpush1.bf16.msra.mxu0 0
    %345 = vmatprep.subr.bf16.mxu0 0
    %346 = vmatpush1.bf16.msra.mxu0 0
    %347 = vmatprep.mubr.bf16.mxu0 0
    %348 = vmatmul.mubr.bf16.gmra.mrb[0].mxu0 %v314
    %v349 = vpop.f32.mrb[0].mxu0
    %v350 = vadd.f32 0.0, %v349
    %v351 = vpop.f32.mrb[0].mxu0
    %v352 = vpop.f32.mrb[0].mxu0
    %v353 = vpop.f32.mrb[0].mxu0
    %354 = vdwg.mxu0
    %v355 = vadd.f32 %v200, %v350
    %v356 = vmax.f32 %v355, 0.0
    %v357 = vpack.c.bf16 %v356, %v356
    %358 = vmatprep.subr.bf16.mxu0 0
    %359 = vmatpush1.bf16.msra.mxu0 %v256
    %360 = vmatprep.subr.bf16.mxu0 0
    %361 = vmatpush1.bf16.msra.mxu0 %v257
    %362 = vmatprep.subr.bf16.mxu0 0
    %363 = vmatpush1.bf16.msra.mxu0 %v258
    %364 = vmatprep.subr.bf16.mxu0 0
    %365 = vmatpush1.bf16.msra.mxu0 %v259
    %366 = vmatprep.subr.bf16.mxu0 0
    %367 = vmatpush1.bf16.msra.mxu0 %v260
    %368 = vmatprep.subr.bf16.mxu0 0
    %369 = vmatpush1.bf16.msra.mxu0 %v261
    %370 = vmatprep.subr.bf16.mxu0 0
    %371 = vmatpush1.bf16.msra.mxu0 %v262
    %372 = vmatprep.subr.bf16.mxu0 0
    %373 = vmatpush1.bf16.msra.mxu0 %v263
    %374 = vmatprep.subr.bf16.mxu0 0
    %375 = vmatpush1.bf16.msra.mxu0 0
    %376 = vmatprep.subr.bf16.mxu0 0
    %377 = vmatpush1.bf16.msra.mxu0 0
    %378 = vmatprep.subr.bf16.mxu0 0
    %379 = vmatpush1.bf16.msra.mxu0 0
    %380 = vmatprep.subr.bf16.mxu0 0
    %381 = vmatpush1.bf16.msra.mxu0 0
    %382 = vmatprep.subr.bf16.mxu0 0
    %383 = vmatpush1.bf16.msra.mxu0 0
    %384 = vmatprep.subr.bf16.mxu0 0
    %385 = vmatpush1.bf16.msra.mxu0 0
    %386 = vmatprep.subr.bf16.mxu0 0
    %387 = vmatpush1.bf16.msra.mxu0 0
    %388 = vmatprep.subr.bf16.mxu0 0
    %389 = vmatpush1.bf16.msra.mxu0 0
    %390 = vmatprep.mubr.bf16.mxu0 0
    %391 = vmatmul.mubr.bf16.gmra.mrb[0].mxu0 %v357
    %v392 = vpop.f32.mrb[0].mxu0
    %v393 = vadd.f32 0.0, %v392
    %v394 = vpop.f32.mrb[0].mxu0
    %v395 = vpop.f32.mrb[0].mxu0
    %v396 = vpop.f32.mrb[0].mxu0
    %397 = vdwg.mxu0
    %v398 = vadd.f32 %v203, %v393
    %v399 = vmax.f32 %v398, 0.0
    %v400 = vpack.c.bf16 %v399, %v399
    %401 = vmatprep.subr.bf16.mxu0 0
    %402 = vmatpush1.bf16.msra.mxu0 %v256
    %403 = vmatprep.subr.bf16.mxu0 0
    %404 = vmatpush1.bf16.msra.mxu0 %v257
    %405 = vmatprep.subr.bf16.mxu0 0
    %406 = vmatpush1.bf16.msra.mxu0 %v258
    %407 = vmatprep.subr.bf16.mxu0 0
    %408 = vmatpush1.bf16.msra.mxu0 %v259
    %409 = vmatprep.subr.bf16.mxu0 0
    %410 = vmatpush1.bf16.msra.mxu0 %v260
    %411 = vmatprep.subr.bf16.mxu0 0
    %412 = vmatpush1.bf16.msra.mxu0 %v261
    %413 = vmatprep.subr.bf16.mxu0 0
    %414 = vmatpush1.bf16.msra.mxu0 %v262
    %415 = vmatprep.subr.bf16.mxu0 0
    %416 = vmatpush1.bf16.msra.mxu0 %v263
    %417 = vmatprep.subr.bf16.mxu0 0
    %418 = vmatpush1.bf16.msra.mxu0 0
    %419 = vmatprep.subr.bf16.mxu0 0
    %420 = vmatpush1.bf16.msra.mxu0 0
    %421 = vmatprep.subr.bf16.mxu0 0
    %422 = vmatpush1.bf16.msra.mxu0 0
    %423 = vmatprep.subr.bf16.mxu0 0
    %424 = vmatpush1.bf16.msra.mxu0 0
    %425 = vmatprep.subr.bf16.mxu0 0
    %426 = vmatpush1.bf16.msra.mxu0 0
    %427 = vmatprep.subr.bf16.mxu0 0
    %428 = vmatpush1.bf16.msra.mxu0 0
    %429 = vmatprep.subr.bf16.mxu0 0
    %430 = vmatpush1.bf16.msra.mxu0 0
    %431 = vmatprep.subr.bf16.mxu0 0
    %432 = vmatpush1.bf16.msra.mxu0 0
    %433 = vmatprep.mubr.bf16.mxu0 0
    %434 = vmatmul.mubr.bf16.gmra.mrb[0].mxu0 %v400
    %v435 = vpop.f32.mrb[0].mxu0
    %v436 = vadd.f32 0.0, %v435
    %v437 = vpop.f32.mrb[0].mxu0
    %v438 = vpop.f32.mrb[0].mxu0
    %v439 = vpop.f32.mrb[0].mxu0
    %440 = vdwg.mxu0
    %v441 = vadd.f32 %v208, %v436
    %v442 = vmax.f32 %v441, 0.0
    %v443 = vpack.c.bf16 %v442, %v442
    %444 = vmatprep.subr.bf16.mxu0 0
    %445 = vmatpush1.bf16.msra.mxu0 %v256
    %446 = vmatprep.subr.bf16.mxu0 0
    %447 = vmatpush1.bf16.msra.mxu0 %v257
    %448 = vmatprep.subr.bf16.mxu0 0
    %449 = vmatpush1.bf16.msra.mxu0 %v258
    %450 = vmatprep.subr.bf16.mxu0 0
    %451 = vmatpush1.bf16.msra.mxu0 %v259
    %452 = vmatprep.subr.bf16.mxu0 0
    %453 = vmatpush1.bf16.msra.mxu0 %v260
    %454 = vmatprep.subr.bf16.mxu0 0
    %455 = vmatpush1.bf16.msra.mxu0 %v261
    %456 = vmatprep.subr.bf16.mxu0 0
    %457 = vmatpush1.bf16.msra.mxu0 %v262
    %458 = vmatprep.subr.bf16.mxu0 0
    %459 = vmatpush1.bf16.msra.mxu0 %v263
    %460 = vmatprep.subr.bf16.mxu0 0
    %461 = vmatpush1.bf16.msra.mxu0 0
    %462 = vmatprep.subr.bf16.mxu0 0
    %463 = vmatpush1.bf16.msra.mxu0 0
    %464 = vmatprep.subr.bf16.mxu0 0
    %465 = vmatpush1.bf16.msra.mxu0 0
    %466 = vmatprep.subr.bf16.mxu0 0
    %467 = vmatpush1.bf16.msra.mxu0 0
    %468 = vmatprep.subr.bf16.mxu0 0
    %469 = vmatpush1.bf16.msra.mxu0 0
    %470 = vmatprep.subr.bf16.mxu0 0
    %471 = vmatpush1.bf16.msra.mxu0 0
    %472 = vmatprep.subr.bf16.mxu0 0
    %473 = vmatpush1.bf16.msra.mxu0 0
    %474 = vmatprep.subr.bf16.mxu0 0
    %475 = vmatpush1.bf16.msra.mxu0 0
    %476 = vmatprep.mubr.bf16.mxu0 0
    %477 = vmatmul.mubr.bf16.gmra.mrb[0].mxu0 %v443
    %v478 = vpop.f32.mrb[0].mxu0
    %v479 = vadd.f32 0.0, %v478
    %v480 = vpop.f32.mrb[0].mxu0
    %v481 = vpop.f32.mrb[0].mxu0
    %v482 = vpop.f32.mrb[0].mxu0
    %483 = vdwg.mxu0
    %v484 = vadd.f32 %v211, %v479
    %v485 = vmax.f32 %v484, 0.0
    %v486 = vpack.c.bf16 %v485, %v485
    %487 = vmatprep.subr.bf16.mxu0 0
    %488 = vmatpush1.bf16.msra.mxu0 %v256
    %489 = vmatprep.subr.bf16.mxu0 0
    %490 = vmatpush1.bf16.msra.mxu0 %v257
    %491 = vmatprep.subr.bf16.mxu0 0
    %492 = vmatpush1.bf16.msra.mxu0 %v258
    %493 = vmatprep.subr.bf16.mxu0 0
    %494 = vmatpush1.bf16.msra.mxu0 %v259
    %495 = vmatprep.subr.bf16.mxu0 0
    %496 = vmatpush1.bf16.msra.mxu0 %v260
    %497 = vmatprep.subr.bf16.mxu0 0
    %498 = vmatpush1.bf16.msra.mxu0 %v261
    %499 = vmatprep.subr.bf16.mxu0 0
    %500 = vmatpush1.bf16.msra.mxu0 %v262
    %501 = vmatprep.subr.bf16.mxu0 0
    %502 = vmatpush1.bf16.msra.mxu0 %v263
    %503 = vmatprep.subr.bf16.mxu0 0
    %504 = vmatpush1.bf16.msra.mxu0 0
    %505 = vmatprep.subr.bf16.mxu0 0
    %506 = vmatpush1.bf16.msra.mxu0 0
    %507 = vmatprep.subr.bf16.mxu0 0
    %508 = vmatpush1.bf16.msra.mxu0 0
    %509 = vmatprep.subr.bf16.mxu0 0
    %510 = vmatpush1.bf16.msra.mxu0 0
    %511 = vmatprep.subr.bf16.mxu0 0
    %512 = vmatpush1.bf16.msra.mxu0 0
    %513 = vmatprep.subr.bf16.mxu0 0
    %514 = vmatpush1.bf16.msra.mxu0 0
    %515 = vmatprep.subr.bf16.mxu0 0
    %516 = vmatpush1.bf16.msra.mxu0 0
    %517 = vmatprep.subr.bf16.mxu0 0
    %518 = vmatpush1.bf16.msra.mxu0 0
    %519 = vmatprep.mubr.bf16.mxu0 0
    %520 = vmatmul.mubr.bf16.gmra.mrb[0].mxu0 %v486
    %v521 = vpop.f32.mrb[0].mxu0
    %v522 = vadd.f32 0.0, %v521
    %v523 = vpop.f32.mrb[0].mxu0
    %v524 = vpop.f32.mrb[0].mxu0
    %v525 = vpop.f32.mrb[0].mxu0
    %526 = vdwg.mxu0
    %v527 = vadd.f32 %v216, %v522
    %v528 = vmax.f32 %v527, 0.0
    %v529 = vpack.c.bf16 %v528, %v528
    %530 = vmatprep.subr.bf16.mxu0 0
    %531 = vmatpush1.bf16.msra.mxu0 %v256
    %532 = vmatprep.subr.bf16.mxu0 0
    %533 = vmatpush1.bf16.msra.mxu0 %v257
    %534 = vmatprep.subr.bf16.mxu0 0
    %535 = vmatpush1.bf16.msra.mxu0 %v258
    %536 = vmatprep.subr.bf16.mxu0 0
    %537 = vmatpush1.bf16.msra.mxu0 %v259
    %538 = vmatprep.subr.bf16.mxu0 0
    %539 = vmatpush1.bf16.msra.mxu0 %v260
    %540 = vmatprep.subr.bf16.mxu0 0
    %541 = vmatpush1.bf16.msra.mxu0 %v261
    %542 = vmatprep.subr.bf16.mxu0 0
    %543 = vmatpush1.bf16.msra.mxu0 %v262
    %544 = vmatprep.subr.bf16.mxu0 0
    %545 = vmatpush1.bf16.msra.mxu0 %v263
    %546 = vmatprep.subr.bf16.mxu0 0
    %547 = vmatpush1.bf16.msra.mxu0 0
    %548 = vmatprep.subr.bf16.mxu0 0
    %549 = vmatpush1.bf16.msra.mxu0 0
    %550 = vmatprep.subr.bf16.mxu0 0
    %551 = vmatpush1.bf16.msra.mxu0 0
    %552 = vmatprep.subr.bf16.mxu0 0
    %553 = vmatpush1.bf16.msra.mxu0 0
    %554 = vmatprep.subr.bf16.mxu0 0
    %555 = vmatpush1.bf16.msra.mxu0 0
    %556 = vmatprep.subr.bf16.mxu0 0
    %557 = vmatpush1.bf16.msra.mxu0 0
    %558 = vmatprep.subr.bf16.mxu0 0
    %559 = vmatpush1.bf16.msra.mxu0 0
    %560 = vmatprep.subr.bf16.mxu0 0
    %561 = vmatpush1.bf16.msra.mxu0 0
    %562 = vmatprep.mubr.bf16.mxu0 0
    %563 = vmatmul.mubr.bf16.gmra.mrb[0].mxu0 %v529
    %v564 = vpop.f32.mrb[0].mxu0
    %v565 = vadd.f32 0.0, %v564
    %v566 = vpop.f32.mrb[0].mxu0
    %v567 = vpop.f32.mrb[0].mxu0
    %v568 = vpop.f32.mrb[0].mxu0
    %569 = vdwg.mxu0
    %v570 = vadd.f32 %v219, %v565
    %v571 = vmax.f32 %v570, 0.0
    %v572 = vpack.c.bf16 %v571, %v571
    %v573 = vld [vmem:[#allocation2] sm:$0xf]
    %v574 = vld [vmem:[#allocation2 + $0x4] sm:$0xf]
    %v575 = vld [vmem:[#allocation2 + $0x8] sm:$0xf]
    %v576 = vld [vmem:[#allocation2 + $0xc] sm:$0xf]
    %v577 = vld [vmem:[#allocation2 + $0x10] sm:$0xf]
    %v578 = vld [vmem:[#allocation2 + $0x14] sm:$0xf]
    %v579 = vld [vmem:[#allocation2 + $0x18] sm:$0xf]
    %v580 = vld [vmem:[#allocation2 + $0x1c] sm:$0xf]
    %v581 = vld [vmem:[#allocation2 + $0x20] sm:$0xf]
    %v582 = vld [vmem:[#allocation2 + $0x24] sm:$0xf]
    %v583 = vld [vmem:[#allocation2 + $0x28] sm:$0xf]
    %v584 = vld [vmem:[#allocation2 + $0x2c] sm:$0xf]
    %v585 = vld [vmem:[#allocation2 + $0x30] sm:$0xf]
    %v586 = vld [vmem:[#allocation2 + $0x34] sm:$0xf]
    %v587 = vld [vmem:[#allocation2 + $0x38] sm:$0xf]
    %v588 = vld [vmem:[#allocation2 + $0x3c] sm:$0xf]
    %v589 = vld [vmem:[%s5] sm:$0x1]
    %v591 = vlaneseq
    %v592 = vshrl.u32 %v591, 7
    %v593 = vsub.s32 0, %v592
    %v594 = vrot.slane %v589, %v593
    %v612 = vunpack.c.l.b16 %v573
    %v613 = vunpack.c.l.b16 %v574
    %v614 = vunpack.c.l.b16 %v575
    %v615 = vunpack.c.l.b16 %v576
    %v616 = vunpack.c.l.b16 %v577
    %v617 = vunpack.c.l.b16 %v578
    %v618 = vunpack.c.l.b16 %v579
    %v619 = vunpack.c.l.b16 %v580
    %v620 = vunpack.c.l.b16 %v581
    %v621 = vunpack.c.l.b16 %v582
    %v622 = vunpack.c.l.b16 %v583
    %v623 = vunpack.c.l.b16 %v584
    %v624 = vunpack.c.l.b16 %v585
    %v625 = vunpack.c.l.b16 %v586
    %v626 = vunpack.c.l.b16 %v587
    %v627 = vunpack.c.l.b16 %v588
    %v628 = vpack.c.b16 %v613, %v612
    %v629 = vpack.c.b16 %v615, %v614
    %v630 = vpack.c.b16 %v617, %v616
    %v631 = vpack.c.b16 %v619, %v618
    %v632 = vpack.c.b16 %v621, %v620
    %v633 = vpack.c.b16 %v623, %v622
    %v634 = vpack.c.b16 %v625, %v624
    %v635 = vpack.c.b16 %v627, %v626
    %644 = vmatprep.subr.bf16.mxu0 0
    %645 = vmatpush1.bf16.msra.mxu0 %v628
    %646 = vmatprep.subr.bf16.mxu0 0
    %647 = vmatpush1.bf16.msra.mxu0 %v629
    %648 = vmatprep.subr.bf16.mxu0 0
    %649 = vmatpush1.bf16.msra.mxu0 %v630
    %650 = vmatprep.subr.bf16.mxu0 0
    %651 = vmatpush1.bf16.msra.mxu0 %v631
    %652 = vmatprep.subr.bf16.mxu0 0
    %653 = vmatpush1.bf16.msra.mxu0 %v632
    %654 = vmatprep.subr.bf16.mxu0 0
    %655 = vmatpush1.bf16.msra.mxu0 %v633
    %656 = vmatprep.subr.bf16.mxu0 0
    %657 = vmatpush1.bf16.msra.mxu0 %v634
    %658 = vmatprep.subr.bf16.mxu0 0
    %659 = vmatpush1.bf16.msra.mxu0 %v635
    %660 = vmatprep.subr.bf16.mxu0 0
    %661 = vmatpush1.bf16.msra.mxu0 0
    %662 = vmatprep.subr.bf16.mxu0 0
    %663 = vmatpush1.bf16.msra.mxu0 0
    %664 = vmatprep.subr.bf16.mxu0 0
    %665 = vmatpush1.bf16.msra.mxu0 0
    %666 = vmatprep.subr.bf16.mxu0 0
    %667 = vmatpush1.bf16.msra.mxu0 0
    %668 = vmatprep.subr.bf16.mxu0 0
    %669 = vmatpush1.bf16.msra.mxu0 0
    %670 = vmatprep.subr.bf16.mxu0 0
    %671 = vmatpush1.bf16.msra.mxu0 0
    %672 = vmatprep.subr.bf16.mxu0 0
    %673 = vmatpush1.bf16.msra.mxu0 0
    %674 = vmatprep.subr.bf16.mxu0 0
    %675 = vmatpush1.bf16.msra.mxu0 0
    %676 = vmatprep.mubr.bf16.mxu0 0
    %677 = vmatmul.mubr.bf16.gmra.mrb[0].mxu0 %v572
    %v678 = vpop.f32.mrb[0].mxu0
    %v679 = vadd.f32 %v594, %v678
    %v680 = vpop.f32.mrb[0].mxu0
    %v681 = vpop.f32.mrb[0].mxu0
    %v682 = vpop.f32.mrb[0].mxu0
    %683 = vdwg.mxu0
    %684 = vst [vmem:[%s6] sm:$0xff] %v679
    // Predicated region
    $region30: #{rnn_model_forward.1} parent=1 // pred_check
      _
    $region31: #{rnn_model_forward.1} parent=1 // pred_check_branch
      %686 = sbr.rel (0) target = $region33
    $region32: #{rnn_model_forward.1} parent=1 // pred_region
      _
    $region33: #{rnn_model_forward.1} parent=1 // pred_fallthru
      _
    // Predicated region
    $region34: #{rnn_model_forward.1} parent=1 // pred_check
      _
    $region35: #{rnn_model_forward.1} parent=1 // pred_check_branch
      %688 = sbr.rel (0) target = $region37
    $region36: #{rnn_model_forward.1} parent=1 // pred_region
      _
    $region37: #{rnn_model_forward.1} parent=1 // pred_fallthru
      _
    %689 = vsyncpa [#allocation3], 1

</llo_original>
